<compile_context>
chip_gen: v7x
topology: tpu7x:2x2x1
jax: 0.10.0
libtpu: 0.0.40
codegen_flags: <defaults>
</compile_context>

<pallas_src>
import jax
import jax.numpy as jnp
from jax.experimental import pallas as pl
from jax.experimental.pallas import tpu as pltpu

K1, K2 = 5, 10            # conv1 / conv2 kernel sizes
L_IN = 126                # input length implied by x.view(-1, 26)
LANES = 128               # lane-padded input width
L1 = L_IN - K1 + 1        # 122  (conv1 output length)
P1 = L1 // 2              # 61   (pool1 output length)
L2 = P1 - K2 + 1          # 52   (conv2 output length)
P2 = L2 // 2              # 26   (pool2 output length == fc1 input)
W2 = 2 * (L2 - 1) + 1     # 103  (conv2 output kept "wide": y2[:, j] at lane 2*j)
WM2 = W2 - 2              # 101  (pool2 output kept "wide": p2[:, i] at lane 4*i)


def cnn1d_kernel(x_ref,                                   # (TN, 128)   VMEM
                 cw1_ref, cb1_ref,                        # (1,5),(1,1) SMEM
                 cw2_ref, cb2_ref,                        # (1,10),(1,1) SMEM
                 w1w_ref, b1_ref,                         # (101,50),(1,50) VMEM
                 w2_ref, b2_ref,                          # (50,20),(1,20)  VMEM
                 w3_ref, b3_ref,                          # (20,2),(1,2)    VMEM
                 out_ref):                                # (TN, 2)     VMEM
    xv = x_ref[...]                                       # single VMEM load
    tn = xv.shape[0]

    # ---- conv1 (1->1 ch, k=5) shift-and-add + bias + relu --------------------
    y1 = jnp.full((tn, L1), cb1_ref[0, 0], dtype=jnp.float32)
    for k in range(K1):                                   # static unrolled
        y1 = y1 + cw1_ref[0, k] * xv[:, k:k + L1]
    y1 = jnp.maximum(y1, 0.0)

    # ---- pool1: pairwise max of adjacent lanes (kept wide: p1[j] at lane 2j) --
    m1 = jnp.maximum(y1[:, :L1 - 1], y1[:, 1:L1])         # (tn, 121)

    # ---- conv2 (k=10) on the stride-2 view of m1 (kept wide: y2[j] at lane 2j)
    y2 = jnp.full((tn, W2), cb2_ref[0, 0], dtype=jnp.float32)
    for k in range(K2):
        y2 = y2 + cw2_ref[0, k] * m1[:, 2 * k:2 * k + W2]
    y2 = jnp.maximum(y2, 0.0)

    # ---- pool2: pairwise max with stride-2 shift (p2[i] at lane 4i of m2) -----
    m2 = jnp.maximum(y2[:, :W2 - 2], y2[:, 2:W2])         # (tn, 101)

    # ---- fc1 (stride-4 gather folded into the weight) -> relu -> fc2 -> fc3 ---
    h1 = jnp.dot(m2, w1w_ref[...], preferred_element_type=jnp.float32) + b1_ref[...]
    h1 = jnp.maximum(h1, 0.0)
    h2 = jnp.dot(h1, w2_ref[...], preferred_element_type=jnp.float32) + b2_ref[...]
    h2 = jnp.maximum(h2, 0.0)
    out_ref[...] = (jnp.dot(h2, w3_ref[...], preferred_element_type=jnp.float32)
                    + b3_ref[...])


def _round_up(n, m):
    return (n + m - 1) // m * m


def cnn1d_forward(x, params, tile_n=512):
    """x: (N, 1, 126) float32  ->  (N, 2) float32."""
    cw1, cb1, cw2, cb2, w1, b1, w2, b2, w3, b3 = params
    N = x.shape[0]
    x2 = x.reshape(N, x.shape[-1]).astype(jnp.float32)    # squeeze C=1

    # Batch tile: multiple of 8 sublanes, capped at tile_n; pad batch & lanes.
    tn = min(tile_n, _round_up(max(N, 1), 8))
    n_pad = _round_up(N, tn)
    x2 = jnp.pad(x2, ((0, n_pad - N), (0, LANES - L_IN)))

    # Fold the stride-4 "x.view(-1, 26)" gather into fc1's weight matrix:
    # w1w[4*i, :] = w1[i, :], other rows zero.
    w1w = jnp.zeros((WM2, w1.shape[1]), jnp.float32).at[4 * jnp.arange(P2)].set(w1)

    smem = pltpu.MemorySpace.SMEM

    def smem_spec(arr):      # tiny conv scalars, constant block across tiles
        return pl.BlockSpec(arr.shape, lambda i: (0, 0), memory_space=smem)

    def resident(arr):       # VMEM-resident weights, fetched once
        return pl.BlockSpec(arr.shape, lambda i: (0, 0))

    out = pl.pallas_call(
        cnn1d_kernel,
        out_shape=jax.ShapeDtypeStruct((n_pad, 2), jnp.float32),
        grid=(n_pad // tn,),
        in_specs=[pl.BlockSpec((tn, LANES), lambda i: (i, 0)),   # x (pipelined)
                  smem_spec(cw1), smem_spec(cb1),
                  smem_spec(cw2), smem_spec(cb2),
                  resident(w1w), resident(b1),
                  resident(w2), resident(b2),
                  resident(w3), resident(b3)],
        out_specs=pl.BlockSpec((tn, 2), lambda i: (i, 0)),
        compiler_params=pltpu.CompilerParams(
            dimension_semantics=("parallel",)),
    )(x2, cw1, cb1, cw2, cb2, w1w, b1, w2, b2, w3, b3)
    return out[:N]


def init_params(key):
    """Deterministic synthetic parameters with the shapes implied by __init__.

    PyTorch Linear stores weight as (out, in); here FC weights are stored
    pre-transposed as (in, out) so the kernel computes x @ W + b.
    """
    ks = jax.random.split(key, 10)
    f32 = jnp.float32
    cw1 = 0.2 * jax.random.normal(ks[0], (1, K1), f32)     # conv1.weight (1,1,5) squeezed
    cb1 = 0.1 * jax.random.normal(ks[1], (1, 1), f32)      # conv1.bias (1,)
    cw2 = 0.2 * jax.random.normal(ks[2], (1, K2), f32)     # conv2.weight (1,1,10) squeezed
    cb2 = 0.1 * jax.random.normal(ks[3], (1, 1), f32)      # conv2.bias (1,)
    w1 = 0.1 * jax.random.normal(ks[4], (P2, 50), f32)     # fc1.weight.T
    b1 = 0.1 * jax.random.normal(ks[5], (1, 50), f32)
    w2 = 0.1 * jax.random.normal(ks[6], (50, 20), f32)     # fc2.weight.T
    b2 = 0.1 * jax.random.normal(ks[7], (1, 20), f32)
    w3 = 0.1 * jax.random.normal(ks[8], (20, 2), f32)      # fc3.weight.T
    b3 = 0.1 * jax.random.normal(ks[9], (1, 2), f32)
    return (cw1, cb1, cw2, cb2, w1, b1, w2, b2, w3, b3)


def ref_forward(x, params):
    """Plain-JAX reference of the PyTorch forward (for the correctness check)."""
    cw1, cb1, cw2, cb2, w1, b1, w2, b2, w3, b3 = params
    h = x[:, 0, :]

    def conv1d(h, w, b):
        K = w.shape[-1]
        L = h.shape[-1] - K + 1
        return b[0, 0] + sum(w[0, k] * h[:, k:k + L] for k in range(K))

    h = jax.nn.relu(conv1d(h, cw1, cb1))
    h = jnp.max(h.reshape(h.shape[0], -1, 2), axis=-1)     # MaxPool1d(2)
    h = jax.nn.relu(conv1d(h, cw2, cb2))
    h = jnp.max(h.reshape(h.shape[0], -1, 2), axis=-1)     # MaxPool1d(2)
    h = jax.nn.relu(h @ w1 + b1)
    h = jax.nn.relu(h @ w2 + b2)
    return h @ w3 + b3


if __name__ == "__main__":
    key = jax.random.PRNGKey(0)
    k_x, k_p = jax.random.split(key)

    N = 2
    x = jax.random.normal(k_x, (N, 1, L_IN), jnp.float32)  # (batch, channels=1, length=126)
    params = init_params(k_p)

    out = cnn1d_forward(x, params)
    out = jax.block_until_ready(out)

    expected = ref_forward(x, params)
    assert out.shape == (N, 2), out.shape
    assert jnp.allclose(out, expected, atol=1e-4, rtol=1e-4), (out, expected)

    print("KERNEL_OK")
</pallas_src>

<mosaic_0001>
module attributes {stable_mosaic.version = 11 : i64} {
  func.func @cnn1d_kernel(%arg0: i32, %arg1: memref<8x128xf32, #tpu.memory_space<vmem>>, %arg2: memref<1x5xf32, #tpu.memory_space<smem>>, %arg3: memref<1x1xf32, #tpu.memory_space<smem>>, %arg4: memref<1x10xf32, #tpu.memory_space<smem>>, %arg5: memref<1x1xf32, #tpu.memory_space<smem>>, %arg6: memref<101x50xf32, #tpu.memory_space<vmem>>, %arg7: memref<1x50xf32, #tpu.memory_space<vmem>>, %arg8: memref<50x20xf32, #tpu.memory_space<vmem>>, %arg9: memref<1x20xf32, #tpu.memory_space<vmem>>, %arg10: memref<20x2xf32, #tpu.memory_space<vmem>>, %arg11: memref<1x2xf32, #tpu.memory_space<vmem>>, %arg12: memref<8x2xf32, #tpu.memory_space<vmem>>) attributes {dimension_semantics = [#tpu.dimension_semantics<parallel>], iteration_bounds = array<i64: 1>, scalar_prefetch = 0 : i64, scratch_operands = 0 : i64, tpu.core_type = #tpu.core_type<tc>, window_params = [{transform_indices = @transform_0, window_bounds = array<i64: 8, 128>}, {transform_indices = @transform_1, window_bounds = array<i64: 1, 5>}, {transform_indices = @transform_2, window_bounds = array<i64: 1, 1>}, {transform_indices = @transform_3, window_bounds = array<i64: 1, 10>}, {transform_indices = @transform_4, window_bounds = array<i64: 1, 1>}, {pipeline_mode = #tpu.pipeline_mode<synchronous>, transform_indices = @transform_5, window_bounds = array<i64: 101, 50>}, {pipeline_mode = #tpu.pipeline_mode<synchronous>, transform_indices = @transform_6, window_bounds = array<i64: 1, 50>}, {pipeline_mode = #tpu.pipeline_mode<synchronous>, transform_indices = @transform_7, window_bounds = array<i64: 50, 20>}, {pipeline_mode = #tpu.pipeline_mode<synchronous>, transform_indices = @transform_8, window_bounds = array<i64: 1, 20>}, {pipeline_mode = #tpu.pipeline_mode<synchronous>, transform_indices = @transform_9, window_bounds = array<i64: 20, 2>}, {pipeline_mode = #tpu.pipeline_mode<synchronous>, transform_indices = @transform_10, window_bounds = array<i64: 1, 2>}, {transform_indices = @transform_11, window_bounds = array<i64: 8, 2>}]} {
    %c0 = arith.constant 0 : index
    %c0_0 = arith.constant 0 : index
    %0 = vector.load %arg1[%c0, %c0_0] : memref<8x128xf32, #tpu.memory_space<vmem>>, vector<8x128xf32>
    %c0_1 = arith.constant 0 : index
    %c0_2 = arith.constant 0 : index
    %1 = memref.load %arg3[%c0_1, %c0_2] : memref<1x1xf32, #tpu.memory_space<smem>>
    %2 = vector.broadcast %1 : f32 to vector<8x122xf32>
    %c0_3 = arith.constant 0 : index
    %c0_4 = arith.constant 0 : index
    %3 = memref.load %arg2[%c0_3, %c0_4] : memref<1x5xf32, #tpu.memory_space<smem>>
    %4 = vector.extract_strided_slice %0 {offsets = [0, 0], sizes = [8, 122], strides = [1, 1]} : vector<8x128xf32> to vector<8x122xf32>
    %5 = vector.broadcast %3 : f32 to vector<8x122xf32>
    %6 = arith.mulf %5, %4 : vector<8x122xf32>
    %7 = arith.addf %2, %6 : vector<8x122xf32>
    %c0_5 = arith.constant 0 : index
    %c1 = arith.constant 1 : index
    %8 = memref.load %arg2[%c0_5, %c1] : memref<1x5xf32, #tpu.memory_space<smem>>
    %9 = vector.extract_strided_slice %0 {offsets = [0, 1], sizes = [8, 122], strides = [1, 1]} : vector<8x128xf32> to vector<8x122xf32>
    %10 = vector.broadcast %8 : f32 to vector<8x122xf32>
    %11 = arith.mulf %10, %9 : vector<8x122xf32>
    %12 = arith.addf %7, %11 : vector<8x122xf32>
    %c0_6 = arith.constant 0 : index
    %c2 = arith.constant 2 : index
    %13 = memref.load %arg2[%c0_6, %c2] : memref<1x5xf32, #tpu.memory_space<smem>>
    %14 = vector.extract_strided_slice %0 {offsets = [0, 2], sizes = [8, 122], strides = [1, 1]} : vector<8x128xf32> to vector<8x122xf32>
    %15 = vector.broadcast %13 : f32 to vector<8x122xf32>
    %16 = arith.mulf %15, %14 : vector<8x122xf32>
    %17 = arith.addf %12, %16 : vector<8x122xf32>
    %c0_7 = arith.constant 0 : index
    %c3 = arith.constant 3 : index
    %18 = memref.load %arg2[%c0_7, %c3] : memref<1x5xf32, #tpu.memory_space<smem>>
    %19 = vector.extract_strided_slice %0 {offsets = [0, 3], sizes = [8, 122], strides = [1, 1]} : vector<8x128xf32> to vector<8x122xf32>
    %20 = vector.broadcast %18 : f32 to vector<8x122xf32>
    %21 = arith.mulf %20, %19 : vector<8x122xf32>
    %22 = arith.addf %17, %21 : vector<8x122xf32>
    %c0_8 = arith.constant 0 : index
    %c4 = arith.constant 4 : index
    %23 = memref.load %arg2[%c0_8, %c4] : memref<1x5xf32, #tpu.memory_space<smem>>
    %24 = vector.extract_strided_slice %0 {offsets = [0, 4], sizes = [8, 122], strides = [1, 1]} : vector<8x128xf32> to vector<8x122xf32>
    %25 = vector.broadcast %23 : f32 to vector<8x122xf32>
    %26 = arith.mulf %25, %24 : vector<8x122xf32>
    %27 = arith.addf %22, %26 : vector<8x122xf32>
    %cst = arith.constant 0.000000e+00 : f32
    %28 = vector.broadcast %cst : f32 to vector<8x122xf32>
    %29 = arith.maximumf %27, %28 : vector<8x122xf32>
    %30 = vector.extract_strided_slice %29 {offsets = [0, 0], sizes = [8, 121], strides = [1, 1]} : vector<8x122xf32> to vector<8x121xf32>
    %31 = vector.extract_strided_slice %29 {offsets = [0, 1], sizes = [8, 121], strides = [1, 1]} : vector<8x122xf32> to vector<8x121xf32>
    %32 = arith.maximumf %30, %31 : vector<8x121xf32>
    %c0_9 = arith.constant 0 : index
    %c0_10 = arith.constant 0 : index
    %33 = memref.load %arg5[%c0_9, %c0_10] : memref<1x1xf32, #tpu.memory_space<smem>>
    %34 = vector.broadcast %33 : f32 to vector<8x103xf32>
    %c0_11 = arith.constant 0 : index
    %c0_12 = arith.constant 0 : index
    %35 = memref.load %arg4[%c0_11, %c0_12] : memref<1x10xf32, #tpu.memory_space<smem>>
    %36 = vector.extract_strided_slice %32 {offsets = [0, 0], sizes = [8, 103], strides = [1, 1]} : vector<8x121xf32> to vector<8x103xf32>
    %37 = vector.broadcast %35 : f32 to vector<8x103xf32>
    %38 = arith.mulf %37, %36 : vector<8x103xf32>
    %39 = arith.addf %34, %38 : vector<8x103xf32>
    %c0_13 = arith.constant 0 : index
    %c1_14 = arith.constant 1 : index
    %40 = memref.load %arg4[%c0_13, %c1_14] : memref<1x10xf32, #tpu.memory_space<smem>>
    %41 = vector.extract_strided_slice %32 {offsets = [0, 2], sizes = [8, 103], strides = [1, 1]} : vector<8x121xf32> to vector<8x103xf32>
    %42 = vector.broadcast %40 : f32 to vector<8x103xf32>
    %43 = arith.mulf %42, %41 : vector<8x103xf32>
    %44 = arith.addf %39, %43 : vector<8x103xf32>
    %c0_15 = arith.constant 0 : index
    %c2_16 = arith.constant 2 : index
    %45 = memref.load %arg4[%c0_15, %c2_16] : memref<1x10xf32, #tpu.memory_space<smem>>
    %46 = vector.extract_strided_slice %32 {offsets = [0, 4], sizes = [8, 103], strides = [1, 1]} : vector<8x121xf32> to vector<8x103xf32>
    %47 = vector.broadcast %45 : f32 to vector<8x103xf32>
    %48 = arith.mulf %47, %46 : vector<8x103xf32>
    %49 = arith.addf %44, %48 : vector<8x103xf32>
    %c0_17 = arith.constant 0 : index
    %c3_18 = arith.constant 3 : index
    %50 = memref.load %arg4[%c0_17, %c3_18] : memref<1x10xf32, #tpu.memory_space<smem>>
    %51 = vector.extract_strided_slice %32 {offsets = [0, 6], sizes = [8, 103], strides = [1, 1]} : vector<8x121xf32> to vector<8x103xf32>
    %52 = vector.broadcast %50 : f32 to vector<8x103xf32>
    %53 = arith.mulf %52, %51 : vector<8x103xf32>
    %54 = arith.addf %49, %53 : vector<8x103xf32>
    %c0_19 = arith.constant 0 : index
    %c4_20 = arith.constant 4 : index
    %55 = memref.load %arg4[%c0_19, %c4_20] : memref<1x10xf32, #tpu.memory_space<smem>>
    %56 = vector.extract_strided_slice %32 {offsets = [0, 8], sizes = [8, 103], strides = [1, 1]} : vector<8x121xf32> to vector<8x103xf32>
    %57 = vector.broadcast %55 : f32 to vector<8x103xf32>
    %58 = arith.mulf %57, %56 : vector<8x103xf32>
    %59 = arith.addf %54, %58 : vector<8x103xf32>
    %c0_21 = arith.constant 0 : index
    %c5 = arith.constant 5 : index
    %60 = memref.load %arg4[%c0_21, %c5] : memref<1x10xf32, #tpu.memory_space<smem>>
    %61 = vector.extract_strided_slice %32 {offsets = [0, 10], sizes = [8, 103], strides = [1, 1]} : vector<8x121xf32> to vector<8x103xf32>
    %62 = vector.broadcast %60 : f32 to vector<8x103xf32>
    %63 = arith.mulf %62, %61 : vector<8x103xf32>
    %64 = arith.addf %59, %63 : vector<8x103xf32>
    %c0_22 = arith.constant 0 : index
    %c6 = arith.constant 6 : index
    %65 = memref.load %arg4[%c0_22, %c6] : memref<1x10xf32, #tpu.memory_space<smem>>
    %66 = vector.extract_strided_slice %32 {offsets = [0, 12], sizes = [8, 103], strides = [1, 1]} : vector<8x121xf32> to vector<8x103xf32>
    %67 = vector.broadcast %65 : f32 to vector<8x103xf32>
    %68 = arith.mulf %67, %66 : vector<8x103xf32>
    %69 = arith.addf %64, %68 : vector<8x103xf32>
    %c0_23 = arith.constant 0 : index
    %c7 = arith.constant 7 : index
    %70 = memref.load %arg4[%c0_23, %c7] : memref<1x10xf32, #tpu.memory_space<smem>>
    %71 = vector.extract_strided_slice %32 {offsets = [0, 14], sizes = [8, 103], strides = [1, 1]} : vector<8x121xf32> to vector<8x103xf32>
    %72 = vector.broadcast %70 : f32 to vector<8x103xf32>
    %73 = arith.mulf %72, %71 : vector<8x103xf32>
    %74 = arith.addf %69, %73 : vector<8x103xf32>
    %c0_24 = arith.constant 0 : index
    %c8 = arith.constant 8 : index
    %75 = memref.load %arg4[%c0_24, %c8] : memref<1x10xf32, #tpu.memory_space<smem>>
    %76 = vector.extract_strided_slice %32 {offsets = [0, 16], sizes = [8, 103], strides = [1, 1]} : vector<8x121xf32> to vector<8x103xf32>
    %77 = vector.broadcast %75 : f32 to vector<8x103xf32>
    %78 = arith.mulf %77, %76 : vector<8x103xf32>
    %79 = arith.addf %74, %78 : vector<8x103xf32>
    %c0_25 = arith.constant 0 : index
    %c9 = arith.constant 9 : index
    %80 = memref.load %arg4[%c0_25, %c9] : memref<1x10xf32, #tpu.memory_space<smem>>
    %81 = vector.extract_strided_slice %32 {offsets = [0, 18], sizes = [8, 103], strides = [1, 1]} : vector<8x121xf32> to vector<8x103xf32>
    %82 = vector.broadcast %80 : f32 to vector<8x103xf32>
    %83 = arith.mulf %82, %81 : vector<8x103xf32>
    %84 = arith.addf %79, %83 : vector<8x103xf32>
    %cst_26 = arith.constant 0.000000e+00 : f32
    %85 = vector.broadcast %cst_26 : f32 to vector<8x103xf32>
    %86 = arith.maximumf %84, %85 : vector<8x103xf32>
    %87 = vector.extract_strided_slice %86 {offsets = [0, 0], sizes = [8, 101], strides = [1, 1]} : vector<8x103xf32> to vector<8x101xf32>
    %88 = vector.extract_strided_slice %86 {offsets = [0, 2], sizes = [8, 101], strides = [1, 1]} : vector<8x103xf32> to vector<8x101xf32>
    %89 = arith.maximumf %87, %88 : vector<8x101xf32>
    %c0_27 = arith.constant 0 : index
    %c0_28 = arith.constant 0 : index
    %90 = vector.load %arg6[%c0_27, %c0_28] : memref<101x50xf32, #tpu.memory_space<vmem>>, vector<101x50xf32>
    %cst_29 = arith.constant dense<0.000000e+00> : vector<8x50xf32>
    %91 = tpu.matmul %89, %90, %cst_29 {dimension_numbers = #tpu.dot_dimension_numbers<[1], [0], [0], [1], [0, 0, 1, 1], [], []>} : vector<8x101xf32>, vector<101x50xf32>, vector<8x50xf32> -> vector<8x50xf32>
    %c0_30 = arith.constant 0 : index
    %c0_31 = arith.constant 0 : index
    %92 = vector.load %arg7[%c0_30, %c0_31] : memref<1x50xf32, #tpu.memory_space<vmem>>, vector<1x50xf32>
    %93 = vector.broadcast %92 : vector<1x50xf32> to vector<8x50xf32>
    %94 = arith.addf %91, %93 : vector<8x50xf32>
    %cst_32 = arith.constant 0.000000e+00 : f32
    %95 = vector.broadcast %cst_32 : f32 to vector<8x50xf32>
    %96 = arith.maximumf %94, %95 : vector<8x50xf32>
    %c0_33 = arith.constant 0 : index
    %c0_34 = arith.constant 0 : index
    %97 = vector.load %arg8[%c0_33, %c0_34] : memref<50x20xf32, #tpu.memory_space<vmem>>, vector<50x20xf32>
    %cst_35 = arith.constant dense<0.000000e+00> : vector<8x20xf32>
    %98 = tpu.matmul %96, %97, %cst_35 {dimension_numbers = #tpu.dot_dimension_numbers<[1], [0], [0], [1], [0, 0, 1, 1], [], []>} : vector<8x50xf32>, vector<50x20xf32>, vector<8x20xf32> -> vector<8x20xf32>
    %c0_36 = arith.constant 0 : index
    %c0_37 = arith.constant 0 : index
    %99 = vector.load %arg9[%c0_36, %c0_37] : memref<1x20xf32, #tpu.memory_space<vmem>>, vector<1x20xf32>
    %100 = vector.broadcast %99 : vector<1x20xf32> to vector<8x20xf32>
    %101 = arith.addf %98, %100 : vector<8x20xf32>
    %cst_38 = arith.constant 0.000000e+00 : f32
    %102 = vector.broadcast %cst_38 : f32 to vector<8x20xf32>
    %103 = arith.maximumf %101, %102 : vector<8x20xf32>
    %c0_39 = arith.constant 0 : index
    %c0_40 = arith.constant 0 : index
    %104 = vector.load %arg10[%c0_39, %c0_40] : memref<20x2xf32, #tpu.memory_space<vmem>>, vector<20x2xf32>
    %cst_41 = arith.constant dense<0.000000e+00> : vector<8x2xf32>
    %105 = tpu.matmul %103, %104, %cst_41 {dimension_numbers = #tpu.dot_dimension_numbers<[1], [0], [0], [1], [0, 0, 1, 1], [], []>} : vector<8x20xf32>, vector<20x2xf32>, vector<8x2xf32> -> vector<8x2xf32>
    %c0_42 = arith.constant 0 : index
    %c0_43 = arith.constant 0 : index
    %106 = vector.load %arg11[%c0_42, %c0_43] : memref<1x2xf32, #tpu.memory_space<vmem>>, vector<1x2xf32>
    %107 = vector.broadcast %106 : vector<1x2xf32> to vector<8x2xf32>
    %108 = arith.addf %105, %107 : vector<8x2xf32>
    %c0_44 = arith.constant 0 : index
    %c0_45 = arith.constant 0 : index
    %109 = vector.load %arg12[%c0_44, %c0_45] : memref<8x2xf32, #tpu.memory_space<vmem>>, vector<8x2xf32>
    tpu.vector_store %arg12[%c0_44, %c0_45], %108 {strides = array<i32>} : memref<8x2xf32, #tpu.memory_space<vmem>>, vector<8x2xf32>,
    return
  }
  func.func @transform_0(%arg0: i32) -> (i32, i32) {
    %c0_i32 = arith.constant 0 : i32
    %c0_i32_0 = arith.constant 0 : i32
    return %arg0, %c0_i32 : i32, i32
  }
  func.func @transform_1(%arg0: i32) -> (i32, i32) {
    %c0_i32 = arith.constant 0 : i32
    %c0_i32_0 = arith.constant 0 : i32
    %c0_i32_1 = arith.constant 0 : i32
    return %c0_i32, %c0_i32_0 : i32, i32
  }
  func.func @transform_2(%arg0: i32) -> (i32, i32) {
    %c0_i32 = arith.constant 0 : i32
    %c0_i32_0 = arith.constant 0 : i32
    %c0_i32_1 = arith.constant 0 : i32
    return %c0_i32, %c0_i32_0 : i32, i32
  }
  func.func @transform_3(%arg0: i32) -> (i32, i32) {
    %c0_i32 = arith.constant 0 : i32
    %c0_i32_0 = arith.constant 0 : i32
    %c0_i32_1 = arith.constant 0 : i32
    return %c0_i32, %c0_i32_0 : i32, i32
  }
  func.func @transform_4(%arg0: i32) -> (i32, i32) {
    %c0_i32 = arith.constant 0 : i32
    %c0_i32_0 = arith.constant 0 : i32
    %c0_i32_1 = arith.constant 0 : i32
    return %c0_i32, %c0_i32_0 : i32, i32
  }
  func.func @transform_5(%arg0: i32) -> (i32, i32) {
    %c0_i32 = arith.constant 0 : i32
    %c0_i32_0 = arith.constant 0 : i32
    %c0_i32_1 = arith.constant 0 : i32
    return %c0_i32, %c0_i32_0 : i32, i32
  }
  func.func @transform_6(%arg0: i32) -> (i32, i32) {
    %c0_i32 = arith.constant 0 : i32
    %c0_i32_0 = arith.constant 0 : i32
    %c0_i32_1 = arith.constant 0 : i32
    return %c0_i32, %c0_i32_0 : i32, i32
  }
  func.func @transform_7(%arg0: i32) -> (i32, i32) {
    %c0_i32 = arith.constant 0 : i32
    %c0_i32_0 = arith.constant 0 : i32
    %c0_i32_1 = arith.constant 0 : i32
    return %c0_i32, %c0_i32_0 : i32, i32
  }
  func.func @transform_8(%arg0: i32) -> (i32, i32) {
    %c0_i32 = arith.constant 0 : i32
    %c0_i32_0 = arith.constant 0 : i32
    %c0_i32_1 = arith.constant 0 : i32
    return %c0_i32, %c0_i32_0 : i32, i32
  }
  func.func @transform_9(%arg0: i32) -> (i32, i32) {
    %c0_i32 = arith.constant 0 : i32
    %c0_i32_0 = arith.constant 0 : i32
    %c0_i32_1 = arith.constant 0 : i32
    return %c0_i32, %c0_i32_0 : i32, i32
  }
  func.func @transform_10(%arg0: i32) -> (i32, i32) {
    %c0_i32 = arith.constant 0 : i32
    %c0_i32_0 = arith.constant 0 : i32
    %c0_i32_1 = arith.constant 0 : i32
    return %c0_i32, %c0_i32_0 : i32, i32
  }
  func.func @transform_11(%arg0: i32) -> (i32, i32) {
    %c0_i32 = arith.constant 0 : i32
    %c0_i32_0 = arith.constant 0 : i32
    return %arg0, %c0_i32 : i32, i32
  }
}

</mosaic_0001>

<llo_original>
// kernel: tpu_custom_call.1
$region0: #{tpu_custom_call.1}
  #allocation0 [shape = 'u32[]', space=smem, size = 0x4, offset = 0x4, fixed_abs, tag = 'smem constant byte address 0x4 - core index']
  #allocation1 [shape = 'u32[144,128]{1,0:T(1,128)}', space=vmem, size = 0x12000, scoped, tag = 'internal scratch']
  #allocation2 [shape = 'f32[1,1]{1,0:T(1,128)S(6)}', space=smem, size = 0x200, scoped, tag = 'scoped memory for tpu_custom_call.1']
  #allocation3 [shape = 'f32[1,1]{1,0:T(1,128)S(6)}', space=smem, size = 0x200, scoped, tag = 'scoped memory for tpu_custom_call.1']
  %s0 = inlined_call_operand.vmem [shape: f32[8,128], index: 0, kind: input, shape index: {}]
  %s1 = inlined_call_operand.vmem [shape: f32[1,5], index: 1, kind: input, shape index: {}]
  %s2 = inlined_call_operand.<no memory space> [shape: f32[1,1], index: 2, kind: input, shape index: {}]
  %s3 = inlined_call_operand.vmem [shape: f32[1,10], index: 3, kind: input, shape index: {}]
  %s4 = inlined_call_operand.<no memory space> [shape: f32[1,1], index: 4, kind: input, shape index: {}]
  %s5 = inlined_call_operand.vmem [shape: f32[101,50], index: 5, kind: input, shape index: {}]
  %s6 = inlined_call_operand.vmem [shape: f32[1,50], index: 6, kind: input, shape index: {}]
  %s7 = inlined_call_operand.vmem [shape: f32[50,20], index: 7, kind: input, shape index: {}]
  %s8 = inlined_call_operand.vmem [shape: f32[1,20], index: 8, kind: input, shape index: {}]
  %s9 = inlined_call_operand.vmem [shape: f32[20,2], index: 9, kind: input, shape index: {}]
  %s10 = inlined_call_operand.vmem [shape: f32[1,2], index: 10, kind: input, shape index: {}]
  %s11 = inlined_call_operand.vmem [shape: f32[8,2], index: 11, kind: output, shape index: {}]
  %s12 = sld [smem:[#allocation0]]
  $region62: #{tpu_custom_call.1} parent=0
    _
  %s14 = ssub.s32 1, %s12
  %s15 = scalar_select 0, %s14, %s12
  %16 = sst [smem:[#allocation2]] %s2
  %17 = sst [smem:[#allocation3]] %s4
  $region1: #{tpu_custom_call.1} parent=0
    #allocation4 [shape = 'u8[512]{0}', space=smem, size = 0x200, scoped, tag = 'input window, operand 1, single buffered']
    #allocation5 [shape = 's32[1]{0}', space=sflag, size = 0x4, scoped, tag = 'scoped memory for tpu_custom_call.1']
    #allocation6 [shape = 'u8[512]{0}', space=smem, size = 0x200, scoped, tag = 'input window, operand 3, single buffered']
    #allocation7 [shape = 's32[1]{0}', space=sflag, size = 0x4, scoped, tag = 'scoped memory for tpu_custom_call.1']
    %18 = vsyncpa [#allocation5], 0
    %19 = vsyncpa [#allocation7], 0
    // Predicated region
    $region2: #{tpu_custom_call.1} parent=1 // pred_check
      _
    $region3: #{tpu_custom_call.1} parent=1 // pred_check_branch
      %21 = sbr.rel (0) target = $region5
    $region4: #{tpu_custom_call.1} parent=1 // pred_region
      _
    $region5: #{tpu_custom_call.1} parent=1 // pred_fallthru
      _
    // Predicated region
    $region6: #{tpu_custom_call.1} parent=1 // pred_check
      _
    $region7: #{tpu_custom_call.1} parent=1 // pred_check_branch
      %23 = sbr.rel (0) target = $region9
    $region8: #{tpu_custom_call.1} parent=1 // pred_region
      %s25 = ssub.s32 16, 16
      %26 = vsyncadd [#allocation5], %s25
      %s28 = sshll.u32 %s1, 4
      %s29 = int_to_ptr.vmem [resolvable:$true] %s28
      %31 = dma.vmem_to_smem %s29, 16, [#allocation4], [#allocation5]
    $region9: #{tpu_custom_call.1} parent=1 // pred_fallthru
      _
    // Predicated region
    $region10: #{tpu_custom_call.1} parent=1 // pred_check
      _
    $region11: #{tpu_custom_call.1} parent=1 // pred_check_branch
      %33 = sbr.rel (0) target = $region13
    $region12: #{tpu_custom_call.1} parent=1 // pred_region
      _
    $region13: #{tpu_custom_call.1} parent=1 // pred_fallthru
      _
    // Predicated region
    $region14: #{tpu_custom_call.1} parent=1 // pred_check
      _
    $region15: #{tpu_custom_call.1} parent=1 // pred_check_branch
      %35 = sbr.rel (0) target = $region17
    $region16: #{tpu_custom_call.1} parent=1 // pred_region
      %s37 = ssub.s32 16, 16
      %38 = vsyncadd [#allocation7], %s37
      %s40 = sshll.u32 %s3, 4
      %s41 = int_to_ptr.vmem [resolvable:$true] %s40
      %43 = dma.vmem_to_smem %s41, 16, [#allocation6], [#allocation7]
    $region17: #{tpu_custom_call.1} parent=1 // pred_fallthru
      _
    // Predicated region
    $region18: #{tpu_custom_call.1} parent=1 // pred_check
      _
    $region19: #{tpu_custom_call.1} parent=1 // pred_check_branch
      %45 = sbr.rel (0) target = $region21
    $region20: #{tpu_custom_call.1} parent=1 // pred_region
      _
    $region21: #{tpu_custom_call.1} parent=1 // pred_fallthru
      _
    // Predicated region
    $region22: #{tpu_custom_call.1} parent=1 // pred_check
      _
    $region23: #{tpu_custom_call.1} parent=1 // pred_check_branch
      %47 = sbr.rel (0) target = $region25
    $region24: #{tpu_custom_call.1} parent=1 // pred_region
      _
    $region25: #{tpu_custom_call.1} parent=1 // pred_fallthru
      _
    // Predicated region
    $region26: #{tpu_custom_call.1} parent=1 // pred_check
      _
    $region27: #{tpu_custom_call.1} parent=1 // pred_check_branch
      %49 = sbr.rel (0) target = $region29
    $region28: #{tpu_custom_call.1} parent=1 // pred_region
      _
    $region29: #{tpu_custom_call.1} parent=1 // pred_fallthru
      _
    // Predicated region
    $region30: #{tpu_custom_call.1} parent=1 // pred_check
      _
    $region31: #{tpu_custom_call.1} parent=1 // pred_check_branch
      %51 = sbr.rel (0) target = $region33
    $region32: #{tpu_custom_call.1} parent=1 // pred_region
      _
    $region33: #{tpu_custom_call.1} parent=1 // pred_fallthru
      _
    // Predicated region
    $region34: #{tpu_custom_call.1} parent=1 // pred_check
      _
    $region35: #{tpu_custom_call.1} parent=1 // pred_check_branch
      %53 = sbr.rel (0) target = $region37
    $region36: #{tpu_custom_call.1} parent=1 // pred_region
      _
    $region37: #{tpu_custom_call.1} parent=1 // pred_fallthru
      _
    // Predicated region
    $region38: #{tpu_custom_call.1} parent=1 // pred_check
      _
    $region39: #{tpu_custom_call.1} parent=1 // pred_check_branch
      %55 = sbr.rel (0) target = $region41
    $region40: #{tpu_custom_call.1} parent=1 // pred_region
      _
    $region41: #{tpu_custom_call.1} parent=1 // pred_fallthru
      _
    // Predicated region
    $region42: #{tpu_custom_call.1} parent=1 // pred_check
      _
    $region43: #{tpu_custom_call.1} parent=1 // pred_check_branch
      %57 = sbr.rel (0) target = $region45
    $region44: #{tpu_custom_call.1} parent=1 // pred_region
      _
    $region45: #{tpu_custom_call.1} parent=1 // pred_fallthru
      _
    // Predicated region
    $region46: #{tpu_custom_call.1} parent=1 // pred_check
      _
    $region47: #{tpu_custom_call.1} parent=1 // pred_check_branch
      %59 = sbr.rel (0) target = $region49
    $region48: #{tpu_custom_call.1} parent=1 // pred_region
      %60 = dma.done [#allocation5], 16
    $region49: #{tpu_custom_call.1} parent=1 // pred_fallthru
      _
    // Predicated region
    $region50: #{tpu_custom_call.1} parent=1 // pred_check
      _
    $region51: #{tpu_custom_call.1} parent=1 // pred_check_branch
      %62 = sbr.rel (0) target = $region53
    $region52: #{tpu_custom_call.1} parent=1 // pred_region
      %63 = dma.done [#allocation7], 16
    $region53: #{tpu_custom_call.1} parent=1 // pred_fallthru
      _
    %64 = sfence
    %v65 = vld [vmem:[%s0] sm:$0xff]
    %s66 = sld [smem:[#allocation2]]
    %v67 = vstv %s66
    %s68 = sld [smem:[#allocation4]]
    %v69 = vstv %s68
    %v70 = vmul.f32 %v69, %v65
    %v71 = vadd.f32 %v67, %v70
    %s72 = sld [smem:[#allocation4 + $0x1]]
    %v73 = vstv %s72
    %v74 = vmul.f32 %v73, %v65
    %76 = vrot.lane.b32.xlu0 %v74, 127
    %v77 = vpop.permute.xlu0 %76
    %v79 = vadd.f32 %v71, %v77
    %s80 = sld [smem:[#allocation4 + $0x2]]
    %v81 = vstv %s80
    %v82 = vmul.f32 %v81, %v65
    %84 = vrot.lane.b32.xlu0 %v82, 126
    %v85 = vpop.permute.xlu0 %84
    %v87 = vadd.f32 %v79, %v85
    %s88 = sld [smem:[#allocation4 + $0x3]]
    %v89 = vstv %s88
    %v90 = vmul.f32 %v89, %v65
    %92 = vrot.lane.b32.xlu0 %v90, 125
    %v93 = vpop.permute.xlu0 %92
    %v95 = vadd.f32 %v87, %v93
    %s96 = sld [smem:[#allocation4 + $0x4]]
    %v97 = vstv %s96
    %v98 = vmul.f32 %v97, %v65
    %100 = vrot.lane.b32.xlu0 %v98, 124
    %v101 = vpop.permute.xlu0 %100
    %v103 = vadd.f32 %v95, %v101
    %v104 = vmax.f32 %v103, 0.0
    %106 = vrot.lane.b32.xlu0 %v104, 127
    %v107 = vpop.permute.xlu0 %106
    %v109 = vmax.f32 %v104, %v107
    %s110 = sld [smem:[#allocation3]]
    %v111 = vstv %s110
    %s112 = sld [smem:[#allocation6]]
    %v113 = vstv %s112
    %v114 = vmul.f32 %v113, %v109
    %v115 = vadd.f32 %v111, %v114
    %s116 = sld [smem:[#allocation6 + $0x1]]
    %v117 = vstv %s116
    %v118 = vmul.f32 %v117, %v109
    %120 = vrot.lane.b32.xlu0 %v118, 126
    %v121 = vpop.permute.xlu0 %120
    %v123 = vadd.f32 %v115, %v121
    %s124 = sld [smem:[#allocation6 + $0x2]]
    %v125 = vstv %s124
    %v126 = vmul.f32 %v125, %v109
    %128 = vrot.lane.b32.xlu0 %v126, 124
    %v129 = vpop.permute.xlu0 %128
    %v131 = vadd.f32 %v123, %v129
    %s132 = sld [smem:[#allocation6 + $0x3]]
    %v133 = vstv %s132
    %v134 = vmul.f32 %v133, %v109
    %136 = vrot.lane.b32.xlu0 %v134, 122
    %v137 = vpop.permute.xlu0 %136
    %v139 = vadd.f32 %v131, %v137
    %s140 = sld [smem:[#allocation6 + $0x4]]
    %v141 = vstv %s140
    %v142 = vmul.f32 %v141, %v109
    %144 = vrot.lane.b32.xlu0 %v142, 120
    %v145 = vpop.permute.xlu0 %144
    %v147 = vadd.f32 %v139, %v145
    %s148 = sld [smem:[#allocation6 + $0x5]]
    %v149 = vstv %s148
    %v150 = vmul.f32 %v149, %v109
    %152 = vrot.lane.b32.xlu0 %v150, 118
    %v153 = vpop.permute.xlu0 %152
    %v155 = vadd.f32 %v147, %v153
    %s156 = sld [smem:[#allocation6 + $0x6]]
    %v157 = vstv %s156
    %v158 = vmul.f32 %v157, %v109
    %160 = vrot.lane.b32.xlu0 %v158, 116
    %v161 = vpop.permute.xlu0 %160
    %v163 = vadd.f32 %v155, %v161
    %s164 = sld [smem:[#allocation6 + $0x7]]
    %v165 = vstv %s164
    %v166 = vmul.f32 %v165, %v109
    %168 = vrot.lane.b32.xlu0 %v166, 114
    %v169 = vpop.permute.xlu0 %168
    %v171 = vadd.f32 %v163, %v169
    %s172 = sld [smem:[#allocation6 + $0x8]]
    %v173 = vstv %s172
    %v174 = vmul.f32 %v173, %v109
    %176 = vrot.lane.b32.xlu0 %v174, 112
    %v177 = vpop.permute.xlu0 %176
    %v179 = vadd.f32 %v171, %v177
    %s180 = sld [smem:[#allocation6 + $0x9]]
    %v181 = vstv %s180
    %v182 = vmul.f32 %v181, %v109
    %184 = vrot.lane.b32.xlu0 %v182, 110
    %v185 = vpop.permute.xlu0 %184
    %v187 = vadd.f32 %v179, %v185
    %v188 = vmax.f32 %v187, 0.0
    %190 = vrot.lane.b32.xlu0 %v188, 126
    %v191 = vpop.permute.xlu0 %190
    %v193 = vmax.f32 %v188, %v191
    %v194 = vld [vmem:[%s5] sm:$0xff]
    %v195 = vld [vmem:[%s5 + $0x8] sm:$0xff]
    %v196 = vld [vmem:[%s5 + $0x10] sm:$0xff]
    %v197 = vld [vmem:[%s5 + $0x18] sm:$0xff]
    %v198 = vld [vmem:[%s5 + $0x20] sm:$0xff]
    %v199 = vld [vmem:[%s5 + $0x28] sm:$0xff]
    %v200 = vld [vmem:[%s5 + $0x30] sm:$0xff]
    %v201 = vld [vmem:[%s5 + $0x38] sm:$0xff]
    %v202 = vld [vmem:[%s5 + $0x40] sm:$0xff]
    %v203 = vld [vmem:[%s5 + $0x48] sm:$0xff]
    %v204 = vld [vmem:[%s5 + $0x50] sm:$0xff]
    %v205 = vld [vmem:[%s5 + $0x58] sm:$0xff]
    %v206 = vld [vmem:[%s5 + $0x60] sm:$0x1f]
    %v207 = vld [vmem:[%s6] sm:$0x1]
    %v209 = vlaneseq
    %v210 = vshrl.u32 %v209, 7
    %v211 = vsub.s32 0, %v210
    %v212 = vrot.slane %v207, %v211
    %vm214 = vcmask 826368
    %v216 = vsel %vm214, %v193, 0
    %vm218 = vcmask 1044480
    %v220 = vsel %vm218, %v206, 0
    %222 = vmatprep.subr.mxu0 0.0
    %223 = vmatpush1.msra.mxu0 %v194
    %224 = vmatprep.subr.mxu0 0.0
    %225 = vmatpush1.msra.mxu0 %v195
    %226 = vmatprep.subr.mxu0 0.0
    %227 = vmatpush1.msra.mxu0 %v196
    %228 = vmatprep.subr.mxu0 0.0
    %229 = vmatpush1.msra.mxu0 %v197
    %230 = vmatprep.subr.mxu0 0.0
    %231 = vmatpush1.msra.mxu0 %v198
    %232 = vmatprep.subr.mxu0 0.0
    %233 = vmatpush1.msra.mxu0 %v199
    %234 = vmatprep.subr.mxu0 0.0
    %235 = vmatpush1.msra.mxu0 %v200
    %236 = vmatprep.subr.mxu0 0.0
    %237 = vmatpush1.msra.mxu0 %v201
    %238 = vmatprep.subr.mxu0 0.0
    %239 = vmatpush1.msra.mxu0 %v202
    %240 = vmatprep.subr.mxu0 0.0
    %241 = vmatpush1.msra.mxu0 %v203
    %242 = vmatprep.subr.mxu0 0.0
    %243 = vmatpush1.msra.mxu0 %v204
    %244 = vmatprep.subr.mxu0 0.0
    %245 = vmatpush1.msra.mxu0 %v205
    %246 = vmatprep.subr.mxu0 0.0
    %247 = vmatpush1.msra.mxu0 %v220
    %248 = vmatprep.subr.mxu0 0.0
    %249 = vmatpush1.msra.mxu0 0.0
    %250 = vmatprep.subr.mxu0 0.0
    %251 = vmatpush1.msra.mxu0 0.0
    %252 = vmatprep.subr.mxu0 0.0
    %253 = vmatpush1.msra.mxu0 0.0
    %254 = vmatprep.subr.mxu0 0.0
    %255 = vmatpush1.msra.mxu0 0.0
    %256 = vmatprep.subr.mxu0 0.0
    %257 = vmatpush1.msra.mxu0 0.0
    %258 = vmatprep.subr.mxu0 0.0
    %259 = vmatpush1.msra.mxu0 0.0
    %260 = vmatprep.subr.mxu0 0.0
    %261 = vmatpush1.msra.mxu0 0.0
    %262 = vmatprep.subr.mxu0 0.0
    %263 = vmatpush1.msra.mxu0 0.0
    %264 = vmatprep.subr.mxu0 0.0
    %265 = vmatpush1.msra.mxu0 0.0
    %266 = vmatprep.subr.mxu0 0.0
    %267 = vmatpush1.msra.mxu0 0.0
    %268 = vmatprep.subr.mxu0 0.0
    %269 = vmatpush1.msra.mxu0 0.0
    %270 = vmatprep.subr.mxu0 0.0
    %271 = vmatpush1.msra.mxu0 0.0
    %272 = vmatprep.subr.mxu0 0.0
    %273 = vmatpush1.msra.mxu0 0.0
    %274 = vmatprep.subr.mxu0 0.0
    %275 = vmatpush1.msra.mxu0 0.0
    %276 = vmatprep.subr.mxu0 0.0
    %277 = vmatpush1.msra.mxu0 0.0
    %278 = vmatprep.subr.mxu0 0.0
    %279 = vmatpush1.msra.mxu0 0.0
    %280 = vmatprep.subr.mxu0 0.0
    %281 = vmatpush1.msra.mxu0 0.0
    %282 = vmatprep.subr.mxu0 0.0
    %283 = vmatpush1.msra.mxu0 0.0
    %284 = vmatprep.subr.mxu0 0.0
    %285 = vmatpush1.msra.mxu0 0.0
    %286 = vmatprep.mubr.f32.mxu0 0.0
    %287 = vmatmul.mubr.f32.gmra.mrb[0].mxu0 %v216
    %v288 = vpop.f32.mrb[0].mxu0
    %v289 = vadd.f32 %v212, %v288
    %v290 = vpop.f32.mrb[0].mxu0
    %291 = vdwg.mxu0
    %v292 = vmax.f32 %v289, 0.0
    %v293 = vld [vmem:[%s7] sm:$0xff]
    %v294 = vld [vmem:[%s7 + $0x8] sm:$0xff]
    %v295 = vld [vmem:[%s7 + $0x10] sm:$0xff]
    %v296 = vld [vmem:[%s7 + $0x18] sm:$0xff]
    %v297 = vld [vmem:[%s7 + $0x20] sm:$0xff]
    %v298 = vld [vmem:[%s7 + $0x28] sm:$0xff]
    %v299 = vld [vmem:[%s7 + $0x30] sm:$0x3]
    %v300 = vld [vmem:[%s8] sm:$0x1]
    %v302 = vlaneseq
    %v303 = vshrl.u32 %v302, 7
    %v304 = vsub.s32 0, %v303
    %v305 = vrot.slane %v300, %v304
    %vm307 = vcmask 408576
    %v309 = vsel %vm307, %v292, 0
    %vm311 = vcmask 1041408
    %v313 = vsel %vm311, %v299, 0
    %315 = vmatprep.subr.mxu0 0.0
    %316 = vmatpush1.msra.mxu0 %v293
    %317 = vmatprep.subr.mxu0 0.0
    %318 = vmatpush1.msra.mxu0 %v294
    %319 = vmatprep.subr.mxu0 0.0
    %320 = vmatpush1.msra.mxu0 %v295
    %321 = vmatprep.subr.mxu0 0.0
    %322 = vmatpush1.msra.mxu0 %v296
    %323 = vmatprep.subr.mxu0 0.0
    %324 = vmatpush1.msra.mxu0 %v297
    %325 = vmatprep.subr.mxu0 0.0
    %326 = vmatpush1.msra.mxu0 %v298
    %327 = vmatprep.subr.mxu0 0.0
    %328 = vmatpush1.msra.mxu0 %v313
    %329 = vmatprep.subr.mxu0 0.0
    %330 = vmatpush1.msra.mxu0 0.0
    %331 = vmatprep.subr.mxu0 0.0
    %332 = vmatpush1.msra.mxu0 0.0
    %333 = vmatprep.subr.mxu0 0.0
    %334 = vmatpush1.msra.mxu0 0.0
    %335 = vmatprep.subr.mxu0 0.0
    %336 = vmatpush1.msra.mxu0 0.0
    %337 = vmatprep.subr.mxu0 0.0
    %338 = vmatpush1.msra.mxu0 0.0
    %339 = vmatprep.subr.mxu0 0.0
    %340 = vmatpush1.msra.mxu0 0.0
    %341 = vmatprep.subr.mxu0 0.0
    %342 = vmatpush1.msra.mxu0 0.0
    %343 = vmatprep.subr.mxu0 0.0
    %344 = vmatpush1.msra.mxu0 0.0
    %345 = vmatprep.subr.mxu0 0.0
    %346 = vmatpush1.msra.mxu0 0.0
    %347 = vmatprep.subr.mxu0 0.0
    %348 = vmatpush1.msra.mxu0 0.0
    %349 = vmatprep.subr.mxu0 0.0
    %350 = vmatpush1.msra.mxu0 0.0
    %351 = vmatprep.subr.mxu0 0.0
    %352 = vmatpush1.msra.mxu0 0.0
    %353 = vmatprep.subr.mxu0 0.0
    %354 = vmatpush1.msra.mxu0 0.0
    %355 = vmatprep.subr.mxu0 0.0
    %356 = vmatpush1.msra.mxu0 0.0
    %357 = vmatprep.subr.mxu0 0.0
    %358 = vmatpush1.msra.mxu0 0.0
    %359 = vmatprep.subr.mxu0 0.0
    %360 = vmatpush1.msra.mxu0 0.0
    %361 = vmatprep.subr.mxu0 0.0
    %362 = vmatpush1.msra.mxu0 0.0
    %363 = vmatprep.subr.mxu0 0.0
    %364 = vmatpush1.msra.mxu0 0.0
    %365 = vmatprep.subr.mxu0 0.0
    %366 = vmatpush1.msra.mxu0 0.0
    %367 = vmatprep.subr.mxu0 0.0
    %368 = vmatpush1.msra.mxu0 0.0
    %369 = vmatprep.subr.mxu0 0.0
    %370 = vmatpush1.msra.mxu0 0.0
    %371 = vmatprep.subr.mxu0 0.0
    %372 = vmatpush1.msra.mxu0 0.0
    %373 = vmatprep.subr.mxu0 0.0
    %374 = vmatpush1.msra.mxu0 0.0
    %375 = vmatprep.subr.mxu0 0.0
    %376 = vmatpush1.msra.mxu0 0.0
    %377 = vmatprep.subr.mxu0 0.0
    %378 = vmatpush1.msra.mxu0 0.0
    %379 = vmatprep.mubr.f32.mxu0 0.0
    %380 = vmatmul.mubr.f32.gmra.mrb[0].mxu0 %v309
    %v381 = vpop.f32.mrb[0].mxu0
    %v382 = vadd.f32 %v305, %v381
    %v383 = vpop.f32.mrb[0].mxu0
    %384 = vdwg.mxu0
    %v385 = vmax.f32 %v382, 0.0
    %v386 = vld [vmem:[%s9] sm:$0xff]
    %v387 = vld [vmem:[%s9 + $0x8] sm:$0xff]
    %v388 = vld [vmem:[%s9 + $0x10] sm:$0xf]
    %v389 = vld [vmem:[%s10] sm:$0x1]
    %v391 = vlaneseq
    %v392 = vshrl.u32 %v391, 7
    %v393 = vsub.s32 0, %v392
    %v394 = vrot.slane %v389, %v393
    %vm396 = vcmask 162816
    %v398 = vsel %vm396, %v385, 0
    %vm400 = vcmask 1043456
    %v402 = vsel %vm400, %v388, 0
    %404 = vmatprep.subr.mxu0 0.0
    %405 = vmatpush1.msra.mxu0 %v386
    %406 = vmatprep.subr.mxu0 0.0
    %407 = vmatpush1.msra.mxu0 %v387
    %408 = vmatprep.subr.mxu0 0.0
    %409 = vmatpush1.msra.mxu0 %v402
    %410 = vmatprep.subr.mxu0 0.0
    %411 = vmatpush1.msra.mxu0 0.0
    %412 = vmatprep.subr.mxu0 0.0
    %413 = vmatpush1.msra.mxu0 0.0
    %414 = vmatprep.subr.mxu0 0.0
    %415 = vmatpush1.msra.mxu0 0.0
    %416 = vmatprep.subr.mxu0 0.0
    %417 = vmatpush1.msra.mxu0 0.0
    %418 = vmatprep.subr.mxu0 0.0
    %419 = vmatpush1.msra.mxu0 0.0
    %420 = vmatprep.subr.mxu0 0.0
    %421 = vmatpush1.msra.mxu0 0.0
    %422 = vmatprep.subr.mxu0 0.0
    %423 = vmatpush1.msra.mxu0 0.0
    %424 = vmatprep.subr.mxu0 0.0
    %425 = vmatpush1.msra.mxu0 0.0
    %426 = vmatprep.subr.mxu0 0.0
    %427 = vmatpush1.msra.mxu0 0.0
    %428 = vmatprep.subr.mxu0 0.0
    %429 = vmatpush1.msra.mxu0 0.0
    %430 = vmatprep.subr.mxu0 0.0
    %431 = vmatpush1.msra.mxu0 0.0
    %432 = vmatprep.subr.mxu0 0.0
    %433 = vmatpush1.msra.mxu0 0.0
    %434 = vmatprep.subr.mxu0 0.0
    %435 = vmatpush1.msra.mxu0 0.0
    %436 = vmatprep.subr.mxu0 0.0
    %437 = vmatpush1.msra.mxu0 0.0
    %438 = vmatprep.subr.mxu0 0.0
    %439 = vmatpush1.msra.mxu0 0.0
    %440 = vmatprep.subr.mxu0 0.0
    %441 = vmatpush1.msra.mxu0 0.0
    %442 = vmatprep.subr.mxu0 0.0
    %443 = vmatpush1.msra.mxu0 0.0
    %444 = vmatprep.subr.mxu0 0.0
    %445 = vmatpush1.msra.mxu0 0.0
    %446 = vmatprep.subr.mxu0 0.0
    %447 = vmatpush1.msra.mxu0 0.0
    %448 = vmatprep.subr.mxu0 0.0
    %449 = vmatpush1.msra.mxu0 0.0
    %450 = vmatprep.subr.mxu0 0.0
    %451 = vmatpush1.msra.mxu0 0.0
    %452 = vmatprep.subr.mxu0 0.0
    %453 = vmatpush1.msra.mxu0 0.0
    %454 = vmatprep.subr.mxu0 0.0
    %455 = vmatpush1.msra.mxu0 0.0
    %456 = vmatprep.subr.mxu0 0.0
    %457 = vmatpush1.msra.mxu0 0.0
    %458 = vmatprep.subr.mxu0 0.0
    %459 = vmatpush1.msra.mxu0 0.0
    %460 = vmatprep.subr.mxu0 0.0
    %461 = vmatpush1.msra.mxu0 0.0
    %462 = vmatprep.subr.mxu0 0.0
    %463 = vmatpush1.msra.mxu0 0.0
    %464 = vmatprep.subr.mxu0 0.0
    %465 = vmatpush1.msra.mxu0 0.0
    %466 = vmatprep.subr.mxu0 0.0
    %467 = vmatpush1.msra.mxu0 0.0
    %468 = vmatprep.mubr.f32.mxu0 0.0
    %469 = vmatmul.mubr.f32.gmra.mrb[0].mxu0 %v398
    %v470 = vpop.f32.mrb[0].mxu0
    %v471 = vadd.f32 %v394, %v470
    %v472 = vpop.f32.mrb[0].mxu0
    %473 = vdwg.mxu0
    %vm474 = vcmask 15360
    %475 = vst.msk [vmem:[%s11] sm:$0xff] %vm474, %v471
    // Predicated region
    $region54: #{tpu_custom_call.1} parent=1 // pred_check
      _
    $region55: #{tpu_custom_call.1} parent=1 // pred_check_branch
      %477 = sbr.rel (0) target = $region57
    $region56: #{tpu_custom_call.1} parent=1 // pred_region
      _
    $region57: #{tpu_custom_call.1} parent=1 // pred_fallthru
      _
    // Predicated region
    $region58: #{tpu_custom_call.1} parent=1 // pred_check
      _
    $region59: #{tpu_custom_call.1} parent=1 // pred_check_branch
      %479 = sbr.rel (0) target = $region61
    $region60: #{tpu_custom_call.1} parent=1 // pred_region
      _
    $region61: #{tpu_custom_call.1} parent=1 // pred_fallthru
      _
    %480 = vsyncpa [#allocation5], 1
    %481 = vsyncpa [#allocation7], 1

</llo_original>
